<compile_context>
chip_gen: v7x
topology: tpu7x:2x2x1
jax: 0.10.0
libtpu: 0.0.40
codegen_flags: <defaults>
</compile_context>

<pallas_src>
import math
from typing import NamedTuple

import jax
import jax.numpy as jnp
from jax.experimental import pallas as pl
from jax.experimental.pallas import tpu as pltpu

LANE = 128


def _round_up(v: int, m: int) -> int:
    return (v + m - 1) // m * m


def _cdiv(a: int, b: int) -> int:
    return -(-a // b)


def _sublane_min(dtype) -> int:
    """Minimum second-to-last tile dim: 8 (f32), 16 (bf16), 32 (int8/fp8)."""
    return max(8, 32 // jnp.dtype(dtype).itemsize)


def _pick_tile(dim: int, max_tile: int, align: int) -> int:
    """Divisor-aware tile: multiple of `align`, <= ~max_tile, minimal padding."""
    dim_r = _round_up(dim, align)
    if dim_r <= max(max_tile, align):
        return dim_r
    n_blocks = _cdiv(dim_r, max_tile)
    return _round_up(_cdiv(dim_r, n_blocks), align)


# ---------------------------------------------------------------------------
# Kernels
# ---------------------------------------------------------------------------

def _splitbias_kernel_f32_out(x_ref, wt_ref, b_ref, o_ref):
    """f32 output: accumulate directly into the resident output tile."""
    k = pl.program_id(2)

    @pl.when(k == 0)
    def _():
        o_ref[...] = jnp.zeros_like(o_ref)

    # module(x) with bias=None -> MXU matmul, f32 accumulation.
    o_ref[...] += jnp.dot(x_ref[...], wt_ref[...],
                          preferred_element_type=jnp.float32)

    # AddBias: broadcast-add bias.view(1, -1) once, in the k == last epilogue.
    @pl.when(k == pl.num_programs(2) - 1)
    def _():
        o_ref[...] += b_ref[...].astype(o_ref.dtype)


def _splitbias_kernel_scratch_out(x_ref, wt_ref, b_ref, o_ref, acc_ref):
    """Narrow (e.g. bf16) output: f32 VMEM accumulator, cast in the epilogue."""
    k = pl.program_id(2)

    @pl.when(k == 0)
    def _():
        acc_ref[...] = jnp.zeros_like(acc_ref)

    acc_ref[...] += jnp.dot(x_ref[...], wt_ref[...],
                            preferred_element_type=jnp.float32)

    @pl.when(k == pl.num_programs(2) - 1)
    def _():
        o_ref[...] = (acc_ref[...]
                      + b_ref[...].astype(jnp.float32)).astype(o_ref.dtype)


# ---------------------------------------------------------------------------
# One-time parameter prep (hoisted out of the per-call hot path)
# ---------------------------------------------------------------------------

class SplitBiasParams(NamedTuple):
    w_t: jax.Array      # (K_pad, N_pad) pre-transposed, pre-padded weight
    bias2d: jax.Array   # (1, N_pad)
    K: int
    N: int
    tn: int
    tk: int


def prepare_splitbias_params(weight: jax.Array, bias: jax.Array, *,
                             tn: int = 512, tk: int = 512,
                             assumed_tm: int = 512,
                             vmem_budget_bytes: int = 24 << 20) -> SplitBiasParams:
    """Transpose the PyTorch (out, in) weight to (in, out) and pad it ONCE."""
    N, K = weight.shape
    itemsize = jnp.dtype(weight.dtype).itemsize

    tn_eff = _pick_tile(N, tn, LANE)

    # Prefer a single full-K block when the strips fit the double-buffered
    # VMEM budget: the x strip then stays resident across the whole j sweep.
    full_k_bytes = (2 * (assumed_tm * K + K * tn_eff) * itemsize
                    + 2 * assumed_tm * tn_eff * 4)
    if full_k_bytes <= vmem_budget_bytes:
        tk_eff = K                      # full-K block -> no K padding at all
    else:
        tk_eff = _pick_tile(K, tk, LANE)

    K_pad = _round_up(K, tk_eff)
    N_pad = _round_up(N, tn_eff)

    w_t = jnp.transpose(weight)         # (K, N)
    if (K_pad, N_pad) != (K, N):
        w_t = jnp.pad(w_t, ((0, K_pad - K), (0, N_pad - N)))
    bias2d = bias.reshape(1, N)
    if N_pad != N:
        bias2d = jnp.pad(bias2d, ((0, 0), (0, N_pad - N)))

    return SplitBiasParams(w_t, bias2d, K, N, tn_eff, tk_eff)


# ---------------------------------------------------------------------------
# Per-call wrapper
# ---------------------------------------------------------------------------

def split_bias_linear(x: jax.Array, params: SplitBiasParams, *,
                      tm: int = 512,
                      vmem_budget_bytes: int = 24 << 20) -> jax.Array:
    """Forward of SplitBias(nn.Linear(in, out)).  x: (M, K)."""
    M, K = x.shape
    assert K == params.K, (K, params.K)
    K_pad, N_pad = params.w_t.shape
    N, tn, tk = params.N, params.tn, params.tk

    sub = _sublane_min(x.dtype)
    itemsize = jnp.dtype(x.dtype).itemsize
    out_dtype = x.dtype
    out_itemsize = jnp.dtype(out_dtype).itemsize

    tm_eff = _pick_tile(M, tm, sub)

    # Megacore (v7x): if both "parallel" axes would have one step, split M so
    # the second TensorCore isn't idle (M padding is only to the sublane min).
    M_r = _round_up(M, sub)
    if _cdiv(M_r, tm_eff) == 1 and (N_pad // tn) == 1 and M_r >= 2 * sub:
        tm_eff = _round_up(_cdiv(M_r, 2), sub)

    # Keep the double-buffered footprint within budget (v7x: 64 MiB VMEM/TC).
    def _footprint(tm_):
        f = 2 * (tm_ * tk + tk * tn + tn) * itemsize + 2 * tm_ * tn * out_itemsize
        if out_dtype != jnp.float32:
            f += tm_ * tn * 4           # f32 accumulator scratch
        return f

    while _footprint(tm_eff) > vmem_budget_bytes and tm_eff > sub:
        tm_eff = _round_up(tm_eff // 2, sub)

    M_pad = _round_up(M, tm_eff)
    if M_pad != M or K_pad != K:        # hot path: pads x only (weight pre-padded)
        x = jnp.pad(x, ((0, M_pad - M), (0, K_pad - K)))

    grid = (M_pad // tm_eff, N_pad // tn, K_pad // tk)
    gi, gj, gk = grid

    # Advisory cost estimate with tiled reload traffic.
    x_reload = 1 if gk == 1 else gj
    w_reload = 1 if (gj == 1 and gk == 1) else gi
    cost = pl.CostEstimate(
        flops=2 * M_pad * N_pad * K_pad,
        transcendentals=0,
        bytes_accessed=(itemsize * (M_pad * K_pad * x_reload
                                    + K_pad * N_pad * w_reload + N_pad)
                        + out_itemsize * M_pad * N_pad),
    )

    if out_dtype == jnp.float32:
        kernel = _splitbias_kernel_f32_out
        scratch = []
    else:
        kernel = _splitbias_kernel_scratch_out
        scratch = [pltpu.VMEM((tm_eff, tn), jnp.float32)]

    compiler_kwargs = dict(
        dimension_semantics=("parallel", "parallel", "arbitrary"))
    est = _footprint(tm_eff)
    if est > (16 << 20):                # past v5e's default scoped VMEM
        compiler_kwargs["vmem_limit_bytes"] = min(int(est * 3 // 2), 60 << 20)

    out = pl.pallas_call(
        kernel,
        out_shape=jax.ShapeDtypeStruct((M_pad, N_pad), out_dtype),
        grid_spec=pltpu.PrefetchScalarGridSpec(
            num_scalar_prefetch=0,
            grid=grid,
            in_specs=[
                pl.BlockSpec((tm_eff, tk), lambda i, j, k: (i, k)),   # x tile
                pl.BlockSpec((tk, tn), lambda i, j, k: (k, j)),       # weight tile
                pl.BlockSpec((1, tn), lambda i, j, k: (0, j)),        # bias tile
            ],
            out_specs=pl.BlockSpec((tm_eff, tn), lambda i, j, k: (i, j)),
            scratch_shapes=scratch,
        ),
        compiler_params=pltpu.CompilerParams(**compiler_kwargs),
        cost_estimate=cost,
    )(x, params.w_t, params.bias2d)

    if (M_pad, N_pad) != (M, N):
        out = out[:M, :N]
    return out


# ---------------------------------------------------------------------------
# Demo / correctness check
# ---------------------------------------------------------------------------

if __name__ == "__main__":
    key = jax.random.PRNGKey(0)

    def run_case(batch, in_features, out_features, case_key,
                 dtype=jnp.float32, atol=1e-3, rtol=1e-3):
        kx, kw, kb = jax.random.split(case_key, 3)
        # Deterministic nn.Linear-style init: U(-1/sqrt(in), 1/sqrt(in)).
        bound = 1.0 / math.sqrt(in_features)
        weight = jax.random.uniform(kw, (out_features, in_features),
                                    jnp.float32, -bound, bound)   # PyTorch (out, in)
        bias = jax.random.uniform(kb, (out_features,),
                                  jnp.float32, -bound, bound)
        x = jax.random.normal(kx, (batch, in_features), jnp.float32)

        # One-time parameter prep (transpose + pad hoisted out of the hot path).
        params = prepare_splitbias_params(weight.astype(dtype), bias.astype(dtype))
        out = jax.block_until_ready(split_bias_linear(x.astype(dtype), params))

        # Reference (plain JAX) of SplitBias semantics.
        ref = (jnp.matmul(x, weight.T, precision=jax.lax.Precision.HIGHEST)
               + bias[None, :]).astype(dtype)
        assert out.shape == (batch, out_features), out.shape
        assert out.dtype == jnp.dtype(dtype), out.dtype
        err = jnp.max(jnp.abs(out.astype(jnp.float32) - ref.astype(jnp.float32)))
        assert jnp.allclose(out.astype(jnp.float32), ref.astype(jnp.float32),
                            atol=atol, rtol=rtol), f"mismatch vs reference: {err}"

    k1, k2, k3 = jax.random.split(key, 3)
    # Small shape: f32 direct-accumulate path, megacore split on M.
    run_case(16, 32, 128, k1)
    # Exercises M padding and non-power-of-two N / K (divisor-aware tiles, no N pad).
    run_case(30, 200, 384, k2)
    # bf16 inputs/outputs: exercises the f32-scratch accumulator path.
    run_case(24, 96, 256, k3, dtype=jnp.bfloat16, atol=2e-2, rtol=2e-2)

    print("KERNEL_OK")
</pallas_src>

<mosaic_0001>
module attributes {stable_mosaic.version = 11 : i64} {
  func.func @_splitbias_kernel_f32_out(%arg0: i32, %arg1: i32, %arg2: i32, %arg3: memref<8x32xf32, #tpu.memory_space<vmem>>, %arg4: memref<32x128xf32, #tpu.memory_space<vmem>>, %arg5: memref<1x128xf32, #tpu.memory_space<vmem>>, %arg6: memref<8x128xf32, #tpu.memory_space<vmem>>) attributes {dimension_semantics = [#tpu.dimension_semantics<parallel>, #tpu.dimension_semantics<parallel>, #tpu.dimension_semantics<arbitrary>], iteration_bounds = array<i64: 2, 1, 1>, scalar_prefetch = 0 : i64, scratch_operands = 0 : i64, tpu.core_type = #tpu.core_type<tc>, window_params = [{transform_indices = @transform_0, window_bounds = array<i64: 8, 32>}, {transform_indices = @transform_1, window_bounds = array<i64: 32, 128>}, {transform_indices = @transform_2, window_bounds = array<i64: 1, 128>}, {transform_indices = @transform_3, window_bounds = array<i64: 8, 128>}]} {
    %c0_i32 = arith.constant 0 : i32
    %0 = arith.cmpi eq, %arg2, %c0_i32 : i32
    %1 = arith.extui %0 : i1 to i32
    %c0_i32_0 = arith.constant 0 : i32
    %2 = arith.cmpi ne, %1, %c0_i32_0 : i32
    scf.if %2 {
      %cst_10 = arith.constant 0.000000e+00 : f32
      %12 = vector.broadcast %cst_10 : f32 to vector<8x128xf32>
      %c0_11 = arith.constant 0 : index
      %c0_12 = arith.constant 0 : index
      %13 = vector.load %arg6[%c0_11, %c0_12] : memref<8x128xf32, #tpu.memory_space<vmem>>, vector<8x128xf32>
      tpu.vector_store %arg6[%c0_11, %c0_12], %12 {strides = array<i32>} : memref<8x128xf32, #tpu.memory_space<vmem>>, vector<8x128xf32>,
    } else {
    }
    %c0 = arith.constant 0 : index
    %c0_1 = arith.constant 0 : index
    %3 = vector.load %arg6[%c0, %c0_1] : memref<8x128xf32, #tpu.memory_space<vmem>>, vector<8x128xf32>
    %c0_2 = arith.constant 0 : index
    %c0_3 = arith.constant 0 : index
    %4 = vector.load %arg3[%c0_2, %c0_3] : memref<8x32xf32, #tpu.memory_space<vmem>>, vector<8x32xf32>
    %c0_4 = arith.constant 0 : index
    %c0_5 = arith.constant 0 : index
    %5 = vector.load %arg4[%c0_4, %c0_5] : memref<32x128xf32, #tpu.memory_space<vmem>>, vector<32x128xf32>
    %cst = arith.constant dense<0.000000e+00> : vector<8x128xf32>
    %6 = tpu.matmul %4, %5, %cst {dimension_numbers = #tpu.dot_dimension_numbers<[1], [0], [0], [1], [0, 0, 1, 1], [], []>} : vector<8x32xf32>, vector<32x128xf32>, vector<8x128xf32> -> vector<8x128xf32>
    %7 = arith.addf %3, %6 : vector<8x128xf32>
    %c0_6 = arith.constant 0 : index
    %c0_7 = arith.constant 0 : index
    %8 = vector.load %arg6[%c0_6, %c0_7] : memref<8x128xf32, #tpu.memory_space<vmem>>, vector<8x128xf32>
    tpu.vector_store %arg6[%c0_6, %c0_7], %7 {strides = array<i32>} : memref<8x128xf32, #tpu.memory_space<vmem>>, vector<8x128xf32>,
    %c0_i32_8 = arith.constant 0 : i32
    %9 = arith.cmpi eq, %arg2, %c0_i32_8 : i32
    %10 = arith.extui %9 : i1 to i32
    %c0_i32_9 = arith.constant 0 : i32
    %11 = arith.cmpi ne, %10, %c0_i32_9 : i32
    scf.if %11 {
      %c0_10 = arith.constant 0 : index
      %c0_11 = arith.constant 0 : index
      %12 = vector.load %arg6[%c0_10, %c0_11] : memref<8x128xf32, #tpu.memory_space<vmem>>, vector<8x128xf32>
      %c0_12 = arith.constant 0 : index
      %c0_13 = arith.constant 0 : index
      %13 = vector.load %arg5[%c0_12, %c0_13] : memref<1x128xf32, #tpu.memory_space<vmem>>, vector<1x128xf32>
      %14 = vector.broadcast %13 : vector<1x128xf32> to vector<8x128xf32>
      %15 = arith.addf %12, %14 : vector<8x128xf32>
      %c0_14 = arith.constant 0 : index
      %c0_15 = arith.constant 0 : index
      %16 = vector.load %arg6[%c0_14, %c0_15] : memref<8x128xf32, #tpu.memory_space<vmem>>, vector<8x128xf32>
      tpu.vector_store %arg6[%c0_14, %c0_15], %15 {strides = array<i32>} : memref<8x128xf32, #tpu.memory_space<vmem>>, vector<8x128xf32>,
    } else {
    }
    return
  }
  func.func @transform_0(%arg0: i32, %arg1: i32, %arg2: i32) -> (i32, i32) {
    %c0_i32 = arith.constant 0 : i32
    return %arg0, %arg2 : i32, i32
  }
  func.func @transform_1(%arg0: i32, %arg1: i32, %arg2: i32) -> (i32, i32) {
    %c0_i32 = arith.constant 0 : i32
    return %arg2, %arg1 : i32, i32
  }
  func.func @transform_2(%arg0: i32, %arg1: i32, %arg2: i32) -> (i32, i32) {
    %c0_i32 = arith.constant 0 : i32
    %c0_i32_0 = arith.constant 0 : i32
    return %c0_i32, %arg1 : i32, i32
  }
  func.func @transform_3(%arg0: i32, %arg1: i32, %arg2: i32) -> (i32, i32) {
    %c0_i32 = arith.constant 0 : i32
    return %arg0, %arg1 : i32, i32
  }
}

</mosaic_0001>

<llo_original>
// kernel: tpu_custom_call.1
$region0: #{tpu_custom_call.1}
  #allocation0 [shape = 'u32[]', space=smem, size = 0x4, offset = 0x4, fixed_abs, tag = 'smem constant byte address 0x4 - core index']
  #allocation1 [shape = 'u32[144,128]{1,0:T(1,128)}', space=vmem, size = 0x12000, scoped, tag = 'internal scratch']
  %s0 = inlined_call_operand.hbm [shape: f32[16,32], index: 0, kind: input, shape index: {}]
  %s1 = inlined_call_operand.hbm [shape: f32[32,128], index: 1, kind: input, shape index: {}]
  %s2 = inlined_call_operand.vmem [shape: f32[1,128], index: 2, kind: input, shape index: {}]
  %s3 = inlined_call_operand.hbm [shape: f32[16,128], index: 3, kind: output, shape index: {}]
  %s4 = sld [smem:[#allocation0]]
  $region61: #{tpu_custom_call.1} parent=0
    _
  %s6 = ssub.s32 1, %s4
  %s7 = scalar_select 0, %s6, %s4
  $region1: #{tpu_custom_call.1} parent=0
    #allocation2 [shape = 'u8[8192]{0}', space=vmem, size = 0x2000, scoped, tag = 'input window, operand 0']
    #allocation3 [shape = 's32[2]{0}', space=sflag, size = 0x8, scoped, tag = 'scoped memory for tpu_custom_call.1']
    #allocation4 [shape = 's32[2]{0}', space=sflag, size = 0x8, scoped, tag = 'scoped memory for tpu_custom_call.1']
    #allocation5 [shape = 'u8[16384]{0}', space=vmem, size = 0x4000, scoped, tag = 'input window, operand 1, single buffered']
    #allocation6 [shape = 's32[1]{0}', space=sflag, size = 0x4, scoped, tag = 'scoped memory for tpu_custom_call.1']
    #allocation7 [shape = 'u8[8192]{0}', space=vmem, size = 0x2000, scoped, tag = 'output window, operand 0']
    %8 = vsyncpa [#allocation3], 0
    %s9 = scalar_lea.sflag [#allocation3], 1
    %10 = vsyncpa %s9, 0
    %11 = vsyncpa [#allocation6], 0
    %12 = vsyncpa [#allocation4], 0
    %s13 = scalar_lea.sflag [#allocation4], 1
    %14 = vsyncpa %s13, 0
    loop: start=0, step=1, limit=4
    $region2: #{tpu_custom_call.1} parent=1 // loop_pre_header
      _
    $region3: #{tpu_custom_call.1} parent=1 // loop_header
      %s16 = sphi 0, %s20
      %p17 = scmp.ge.s32.totalorder %s16, 4
      %s23 = sphi 0, %s42
      %s24 = sphi 0, %s38
      %s25 = sphi 0, %s34
      %s26 = sphi 0, %s23
      %s27 = sphi 0, %s24
      %s28 = sphi 0, %s25
      %s29 = sphi 0, %s26
      %s30 = sphi 0, %s27
      %s31 = sphi 0, %s28
      %s47 = sphi 0, %s49
      %s50 = sphi 0, %s47
      %s51 = sphi 0, %s50
      %s67 = sphi 0, %s51
      %s75 = sphi 0, %s77
      %s78 = sphi 0, %s75
      %s79 = sphi 0, %s78
      %s95 = sphi 0, %s79
      %s101 = sphi 0, %s103
      %s104 = sphi 0, %s101
      %s105 = sphi 0, %s104
      %s121 = sphi 0, %s105
      %s129 = sphi 0, %s131
      %s132 = sphi 0, %s129
      %s133 = sphi 0, %s132
      %s149 = sphi 0, %s133
    $region4: #{tpu_custom_call.1} parent=1 // loop_header_branch
      %19 = sbr.rel (%p17) target = $region8
    $region5: #{tpu_custom_call.1} parent=1 // loop_body
      %s21 = ssub.s32 %s16, 1
      %s22 = ssub.s32 %s16, 2
      %s32 = sadd.s32 1, %s25
      %p33 = scmp.ge.s32.totalorder %s32, 1
      %s34 = scalar_select %p33, 0, %s32
      %s35 = sadd.s32 1, %s24
      %s36 = scalar_select %p33, %s35, %s24
      %p37 = scmp.ge.s32.totalorder %s36, 1
      %s38 = scalar_select %p37, 0, %s36
      %s39 = sadd.s32 1, %s23
      %s40 = scalar_select %p37, %s39, %s23
      %p41 = scmp.ge.s32.totalorder %s40, 2
      %s42 = scalar_select %p41, 0, %s40
      %s43 = ssub.s32 %s23, %s42
      %s44 = ssub.s32 %s25, %s34
      %s45 = sor.u32 %s43, %s44
      %p46 = scmp.eq.s32.totalorder %s45, 0
      %s48 = sadd.s32 %s47, 1
      %s49 = scalar_select %p46, %s47, %s48
      %p52 = pneg %p46
      %p53 = scmp.eq.s32.totalorder %s16, 1
      %p54 = por %p52, %p53
      %p55 = scmp.ne.s32.totalorder %s47, %s50
      %p56 = scmp.eq.s32.totalorder %s16, 0
      %p57 = por %p55, %p56
      %p58 = scmp.ne.s32.totalorder %s47, %s50
      %p59 = scmp.eq.s32.totalorder %s21, 1
      %p60 = por %p58, %p59
      %p61 = scmp.ne.s32.totalorder %s50, %s51
      %p62 = scmp.eq.s32.totalorder %s21, 0
      %p63 = por %p61, %p62
      %p64 = scmp.ne.s32.totalorder %s50, %s51
      %p65 = scmp.eq.s32.totalorder %s22, 1
      %p66 = por %p64, %p65
      %p68 = scmp.ne.s32.totalorder %s51, %s67
      %p69 = scmp.eq.s32.totalorder %s22, 0
      %p70 = por %p68, %p69
      %s71 = ssub.s32 %s25, %s34
      %s72 = ssub.s32 %s24, %s38
      %s73 = sor.u32 %s71, %s72
      %p74 = scmp.eq.s32.totalorder %s73, 0
      %s76 = sadd.s32 %s75, 1
      %s77 = scalar_select %p74, %s75, %s76
      %p80 = pneg %p74
      %p81 = scmp.eq.s32.totalorder %s16, 1
      %p82 = por %p80, %p81
      %p83 = scmp.ne.s32.totalorder %s75, %s78
      %p84 = scmp.eq.s32.totalorder %s16, 0
      %p85 = por %p83, %p84
      %p86 = scmp.ne.s32.totalorder %s75, %s78
      %p87 = scmp.eq.s32.totalorder %s21, 1
      %p88 = por %p86, %p87
      %p89 = scmp.ne.s32.totalorder %s78, %s79
      %p90 = scmp.eq.s32.totalorder %s21, 0
      %p91 = por %p89, %p90
      %p92 = scmp.ne.s32.totalorder %s78, %s79
      %p93 = scmp.eq.s32.totalorder %s22, 1
      %p94 = por %p92, %p93
      %p96 = scmp.ne.s32.totalorder %s79, %s95
      %p97 = scmp.eq.s32.totalorder %s22, 0
      %p98 = por %p96, %p97
      %s99 = ssub.s32 %s24, %s38
      %p100 = scmp.eq.s32.totalorder %s99, 0
      %s102 = sadd.s32 %s101, 1
      %s103 = scalar_select %p100, %s101, %s102
      %p106 = pneg %p100
      %p107 = scmp.eq.s32.totalorder %s16, 1
      %p108 = por %p106, %p107
      %p109 = scmp.ne.s32.totalorder %s101, %s104
      %p110 = scmp.eq.s32.totalorder %s16, 0
      %p111 = por %p109, %p110
      %p112 = scmp.ne.s32.totalorder %s101, %s104
      %p113 = scmp.eq.s32.totalorder %s21, 1
      %p114 = por %p112, %p113
      %p115 = scmp.ne.s32.totalorder %s104, %s105
      %p116 = scmp.eq.s32.totalorder %s21, 0
      %p117 = por %p115, %p116
      %p118 = scmp.ne.s32.totalorder %s104, %s105
      %p119 = scmp.eq.s32.totalorder %s22, 1
      %p120 = por %p118, %p119
      %p122 = scmp.ne.s32.totalorder %s105, %s121
      %p123 = scmp.eq.s32.totalorder %s22, 0
      %p124 = por %p122, %p123
      %s125 = ssub.s32 %s23, %s42
      %s126 = ssub.s32 %s24, %s38
      %s127 = sor.u32 %s125, %s126
      %p128 = scmp.eq.s32.totalorder %s127, 0
      %s130 = sadd.s32 %s129, 1
      %s131 = scalar_select %p128, %s129, %s130
      %p134 = pneg %p128
      %p135 = scmp.eq.s32.totalorder %s16, 1
      %p136 = por %p134, %p135
      %p137 = scmp.ne.s32.totalorder %s129, %s132
      %p138 = scmp.eq.s32.totalorder %s16, 0
      %p139 = por %p137, %p138
      %p140 = scmp.ne.s32.totalorder %s129, %s132
      %p141 = scmp.eq.s32.totalorder %s21, 1
      %p142 = por %p140, %p141
      %p143 = scmp.ne.s32.totalorder %s132, %s133
      %p144 = scmp.eq.s32.totalorder %s21, 0
      %p145 = por %p143, %p144
      %p146 = scmp.ne.s32.totalorder %s132, %s133
      %p147 = scmp.eq.s32.totalorder %s22, 1
      %p148 = por %p146, %p147
      %p150 = scmp.ne.s32.totalorder %s133, %s149
      %p151 = scmp.eq.s32.totalorder %s22, 0
      %p152 = por %p150, %p151
      %p153 = scmp.le.s32.totalorder 1, %s16
      %p154 = scmp.lt.s32.totalorder %s16, 3
      %p155 = pnand %p153, %p154
      %p156 = pneg %p155
      // Predicated region
      $region9: #{tpu_custom_call.1} parent=5 // pred_check
        _
      $region10: #{tpu_custom_call.1} parent=5 // pred_check_branch
        %158 = sbr.rel (%p155) target = $region12
      $region11: #{tpu_custom_call.1} parent=5 // pred_region
        %s159 = ssub.s32 %s16, 1
        // Predicated region
        $region13: #{tpu_custom_call.1} parent=11 // pred_check
          %p160 = pneg %p91
        $region14: #{tpu_custom_call.1} parent=11 // pred_check_branch
          %162 = sbr.rel (%p160) target = $region16
        $region15: #{tpu_custom_call.1} parent=11 // pred_region
          %s163 = smul.u32 4, %s28
          %s165 = ssub.s32 512, 512
          %166 = vsyncadd [#allocation6], %s165
          %s167 = sadd.s32 %s27, %s163
          %s168 = smul.addr %s167, 128
          %s169 = scalar_lea.hbm %s1, %s168
          %s170 = sshll.u32 [#allocation5], 4
          %s171 = int_to_ptr.vmem [resolvable:$true] %s170
          %176 = dma.hbm_to_vmem [thread:$0]  %s169, 512, %s171, [#allocation6], 128, 128, 8
        $region16: #{tpu_custom_call.1} parent=11 // pred_fallthru
          _
        // Predicated region
        $region17: #{tpu_custom_call.1} parent=11 // pred_check
          %p177 = pneg %p117
        $region18: #{tpu_custom_call.1} parent=11 // pred_check_branch
          %179 = sbr.rel (%p177) target = $region20
        $region19: #{tpu_custom_call.1} parent=11 // pred_region
          %p180 = scmp.lt.s32.totalorder %s27, 0
          %s181 = scalar_select %p180, %s27, 0
          %s182 = scalar_lea.vmem %s2, %s181
        $region20: #{tpu_custom_call.1} parent=11 // pred_fallthru
          _
      $region12: #{tpu_custom_call.1} parent=5 // pred_fallthru
        _
      %p183 = scmp.lt.s32.totalorder %s16, 2
      // Predicated region
      $region21: #{tpu_custom_call.1} parent=5 // pred_check
        %p184 = pneg %p183
      $region22: #{tpu_custom_call.1} parent=5 // pred_check_branch
        %186 = sbr.rel (%p184) target = $region24
      $region23: #{tpu_custom_call.1} parent=5 // pred_region
        // Predicated region
        $region25: #{tpu_custom_call.1} parent=23 // pred_check
          %p187 = pneg %p57
        $region26: #{tpu_custom_call.1} parent=23 // pred_check_branch
          %189 = sbr.rel (%p187) target = $region28
        $region27: #{tpu_custom_call.1} parent=23 // pred_region
          %s190 = sand.u32 %s47, 1
          %s191 = scalar_lea.sflag [#allocation3], %s190
          %s192 = sand.u32 %s47, 1
          %s193 = smul.addr %s192, 8
          %s194 = scalar_lea.vmem [#allocation2], %s193
          %s196 = ssub.s32 128, 128
          %197 = vsyncadd %s191, %s196
          %s198 = sadd.s32 %s25, %s23
          %s199 = smul.addr %s198, 128
          %s200 = scalar_lea.hbm %s0, %s199
          %s202 = sshll.u32 %s194, 4
          %s203 = int_to_ptr.vmem [resolvable:$true] %s202
          %205 = dma.hbm_to_vmem [thread:$0]  %s200, 128, %s203, %s191
        $region28: #{tpu_custom_call.1} parent=23 // pred_fallthru
          _
      $region24: #{tpu_custom_call.1} parent=5 // pred_fallthru
        _
      %p206 = scmp.le.s32.totalorder 1, %s16
      %p207 = scmp.lt.s32.totalorder %s16, 3
      %p208 = pnand %p206, %p207
      %p209 = pneg %p208
      // Predicated region
      $region29: #{tpu_custom_call.1} parent=5 // pred_check
        _
      $region30: #{tpu_custom_call.1} parent=5 // pred_check_branch
        %211 = sbr.rel (%p208) target = $region32
      $region31: #{tpu_custom_call.1} parent=5 // pred_region
        %s212 = ssub.s32 %s16, 1
        %s213 = sand.u32 %s50, 1
        %s214 = scalar_lea.sflag [#allocation3], %s213
        %s215 = sand.u32 %s50, 1
        %s216 = smul.addr %s215, 8
        %s217 = scalar_lea.vmem [#allocation2], %s216
        // Predicated region
        $region33: #{tpu_custom_call.1} parent=31 // pred_check
          %p218 = pneg %p63
        $region34: #{tpu_custom_call.1} parent=31 // pred_check_branch
          %220 = sbr.rel (%p218) target = $region36
        $region35: #{tpu_custom_call.1} parent=31 // pred_region
          %221 = dma.done %s214, 128
        $region36: #{tpu_custom_call.1} parent=31 // pred_fallthru
          _
        // Predicated region
        $region37: #{tpu_custom_call.1} parent=31 // pred_check
          %p222 = pneg %p91
        $region38: #{tpu_custom_call.1} parent=31 // pred_check_branch
          %224 = sbr.rel (%p222) target = $region40
        $region39: #{tpu_custom_call.1} parent=31 // pred_region
          %225 = dma.done [#allocation6], 512
        $region40: #{tpu_custom_call.1} parent=31 // pred_fallthru
          _
        %s226 = sand.u32 %s50, 1
        %s227 = scalar_lea.sflag [#allocation3], %s226
        %s228 = sand.u32 %s50, 1
        %s229 = smul.addr %s228, 8
        %s230 = scalar_lea.vmem [#allocation2], %s229
        %p231 = pneg %p63
        %p232 = pneg %p60
        %p233 = pneg %p91
        %p234 = pneg %p88
        %p235 = scmp.lt.s32.totalorder %s27, 0
        %s236 = scalar_select %p235, %s27, 0
        %s237 = scalar_lea.vmem %s2, %s236
        %p238 = pneg %p117
        %p239 = pneg %p114
        %p240 = pneg %p145
        %p241 = pneg %p142
        %s242 = sand.u32 %s132, 1
        %s243 = scalar_lea.sflag [#allocation4], %s242
        %s244 = sand.u32 %s132, 1
        %s245 = smul.addr %s244, 8
        %s246 = scalar_lea.vmem [#allocation7], %s245
        %s247 = smul.u32 4, %s28
        %p248 = scmp.lt.s32.totalorder %s27, 0
        %s249 = scalar_select %p248, %s27, 0
        %s250 = scalar_lea.vmem %s2, %s249
        %p251 = scmp.eq.s32.totalorder %s28, 0
        // Predicated region
        $region41: #{tpu_custom_call.1} parent=31 // pred_check
          %p252 = pneg %p251
        $region42: #{tpu_custom_call.1} parent=31 // pred_check_branch
          %254 = sbr.rel (%p252) target = $region44
        $region43: #{tpu_custom_call.1} parent=31 // pred_region
          %255 = vst [vmem:[%s246] sm:$0xff] 0.0
        $region44: #{tpu_custom_call.1} parent=31 // pred_fallthru
          _
        %v256 = vld [vmem:[%s246] sm:$0xff]
        %v257 = vld [vmem:[%s217] sm:$0xff]
        %v258 = vld [vmem:[#allocation5] sm:$0xff]
        %v259 = vld [vmem:[#allocation5 + $0x8] sm:$0xff]
        %v260 = vld [vmem:[#allocation5 + $0x10] sm:$0xff]
        %v261 = vld [vmem:[#allocation5 + $0x18] sm:$0xff]
        %vm262 = vcmask 261120
        %v264 = vsel %vm262, %v257, 0
        %266 = vmatprep.subr.mxu0 0.0
        %267 = vmatpush1.msra.mxu0 %v258
        %268 = vmatprep.subr.mxu0 0.0
        %269 = vmatpush1.msra.mxu0 %v259
        %270 = vmatprep.subr.mxu0 0.0
        %271 = vmatpush1.msra.mxu0 %v260
        %272 = vmatprep.subr.mxu0 0.0
        %273 = vmatpush1.msra.mxu0 %v261
        %274 = vmatprep.subr.mxu0 0.0
        %275 = vmatpush1.msra.mxu0 0.0
        %276 = vmatprep.subr.mxu0 0.0
        %277 = vmatpush1.msra.mxu0 0.0
        %278 = vmatprep.subr.mxu0 0.0
        %279 = vmatpush1.msra.mxu0 0.0
        %280 = vmatprep.subr.mxu0 0.0
        %281 = vmatpush1.msra.mxu0 0.0
        %282 = vmatprep.subr.mxu0 0.0
        %283 = vmatpush1.msra.mxu0 0.0
        %284 = vmatprep.subr.mxu0 0.0
        %285 = vmatpush1.msra.mxu0 0.0
        %286 = vmatprep.subr.mxu0 0.0
        %287 = vmatpush1.msra.mxu0 0.0
        %288 = vmatprep.subr.mxu0 0.0
        %289 = vmatpush1.msra.mxu0 0.0
        %290 = vmatprep.subr.mxu0 0.0
        %291 = vmatpush1.msra.mxu0 0.0
        %292 = vmatprep.subr.mxu0 0.0
        %293 = vmatpush1.msra.mxu0 0.0
        %294 = vmatprep.subr.mxu0 0.0
        %295 = vmatpush1.msra.mxu0 0.0
        %296 = vmatprep.subr.mxu0 0.0
        %297 = vmatpush1.msra.mxu0 0.0
        %298 = vmatprep.subr.mxu0 0.0
        %299 = vmatpush1.msra.mxu0 0.0
        %300 = vmatprep.subr.mxu0 0.0
        %301 = vmatpush1.msra.mxu0 0.0
        %302 = vmatprep.subr.mxu0 0.0
        %303 = vmatpush1.msra.mxu0 0.0
        %304 = vmatprep.subr.mxu0 0.0
        %305 = vmatpush1.msra.mxu0 0.0
        %306 = vmatprep.subr.mxu0 0.0
        %307 = vmatpush1.msra.mxu0 0.0
        %308 = vmatprep.subr.mxu0 0.0
        %309 = vmatpush1.msra.mxu0 0.0
        %310 = vmatprep.subr.mxu0 0.0
        %311 = vmatpush1.msra.mxu0 0.0
        %312 = vmatprep.subr.mxu0 0.0
        %313 = vmatpush1.msra.mxu0 0.0
        %314 = vmatprep.subr.mxu0 0.0
        %315 = vmatpush1.msra.mxu0 0.0
        %316 = vmatprep.subr.mxu0 0.0
        %317 = vmatpush1.msra.mxu0 0.0
        %318 = vmatprep.subr.mxu0 0.0
        %319 = vmatpush1.msra.mxu0 0.0
        %320 = vmatprep.subr.mxu0 0.0
        %321 = vmatpush1.msra.mxu0 0.0
        %322 = vmatprep.subr.mxu0 0.0
        %323 = vmatpush1.msra.mxu0 0.0
        %324 = vmatprep.subr.mxu0 0.0
        %325 = vmatpush1.msra.mxu0 0.0
        %326 = vmatprep.subr.mxu0 0.0
        %327 = vmatpush1.msra.mxu0 0.0
        %328 = vmatprep.subr.mxu0 0.0
        %329 = vmatpush1.msra.mxu0 0.0
        %330 = vmatprep.mubr.f32.mxu0 0.0
        %331 = vmatmul.mubr.f32.gmra.mrb[0].mxu0 %v264
        %v332 = vpop.f32.mrb[0].mxu0
        %v333 = vadd.f32 0.0, %v332
        %v334 = vpop.f32.mrb[0].mxu0
        %335 = vdwg.mxu0
        %v336 = vadd.f32 %v256, %v333
        %337 = vst [vmem:[%s246] sm:$0xff] %v336
        // Predicated region
        $region45: #{tpu_custom_call.1} parent=31 // pred_check
          %p338 = pneg %p251
        $region46: #{tpu_custom_call.1} parent=31 // pred_check_branch
          %340 = sbr.rel (%p338) target = $region48
        $region47: #{tpu_custom_call.1} parent=31 // pred_region
          %v341 = vld [vmem:[%s246] sm:$0xff]
          %v342 = vld [vmem:[%s250] sm:$0x1]
          %v344 = vlaneseq
          %v345 = vshrl.u32 %v344, 7
          %v346 = vsub.s32 0, %v345
          %v347 = vrot.slane %v342, %v346
          %v349 = vadd.f32 %v341, %v347
          %350 = vst [vmem:[%s246] sm:$0xff] %v349
        $region48: #{tpu_custom_call.1} parent=31 // pred_fallthru
          _
        %s351 = sand.u32 %s132, 1
        %s352 = scalar_lea.sflag [#allocation4], %s351
        %s353 = sand.u32 %s132, 1
        %s354 = smul.addr %s353, 8
        %s355 = scalar_lea.vmem [#allocation7], %s354
        // Predicated region
        $region49: #{tpu_custom_call.1} parent=31 // pred_check
          %p356 = pneg %p142
        $region50: #{tpu_custom_call.1} parent=31 // pred_check_branch
          %358 = sbr.rel (%p356) target = $region52
        $region51: #{tpu_custom_call.1} parent=31 // pred_region
          %s360 = ssub.s32 128, 128
          %361 = vsyncadd %s352, %s360
          %s362 = sadd.s32 %s27, %s26
          %s363 = smul.addr %s362, 128
          %s364 = scalar_lea.hbm %s3, %s363
          %s366 = sshll.u32 %s355, 4
          %s367 = int_to_ptr.vmem [resolvable:$true] %s366
          %369 = dma.vmem_to_hbm [thread:$0]  %s367, 128, %s364, %s352
        $region52: #{tpu_custom_call.1} parent=31 // pred_fallthru
          _
      $region32: #{tpu_custom_call.1} parent=5 // pred_fallthru
        _
      %p370 = scmp.le.s32.totalorder 2, %s16
      // Predicated region
      $region53: #{tpu_custom_call.1} parent=5 // pred_check
        %p371 = pneg %p370
      $region54: #{tpu_custom_call.1} parent=5 // pred_check_branch
        %373 = sbr.rel (%p371) target = $region56
      $region55: #{tpu_custom_call.1} parent=5 // pred_region
        %s374 = ssub.s32 %s16, 2
        // Predicated region
        $region57: #{tpu_custom_call.1} parent=55 // pred_check
          %p375 = pneg %p148
        $region58: #{tpu_custom_call.1} parent=55 // pred_check_branch
          %377 = sbr.rel (%p375) target = $region60
        $region59: #{tpu_custom_call.1} parent=55 // pred_region
          %s378 = sand.u32 %s133, 1
          %s379 = scalar_lea.sflag [#allocation4], %s378
          %s380 = sand.u32 %s133, 1
          %s381 = smul.addr %s380, 8
          %s382 = scalar_lea.vmem [#allocation7], %s381
          %383 = dma.done %s379, 128
        $region60: #{tpu_custom_call.1} parent=55 // pred_fallthru
          _
      $region56: #{tpu_custom_call.1} parent=5 // pred_fallthru
        _
    $region6: #{tpu_custom_call.1} parent=1 // loop_footer
      %s20 = sadd.s32 1, %s16
    $region7: #{tpu_custom_call.1} parent=1 // loop_footer_branch
      %15 = sbr.rel target = $region3
    $region8: #{tpu_custom_call.1} parent=1 // loop_exit
      _
    %384 = vsyncpa [#allocation3], 1
    %s385 = scalar_lea.sflag [#allocation3], 1
    %386 = vsyncpa %s385, 1
    %387 = vsyncpa [#allocation6], 1
    %388 = vsyncpa [#allocation4], 1
    %s389 = scalar_lea.sflag [#allocation4], 1
    %390 = vsyncpa %s389, 1

</llo_original>
